<compile_context>
chip_gen: v6e
topology: v6e:2x2x1
jax: 0.10.0
libtpu: 0.0.40
codegen_flags: <defaults>
</compile_context>

<pallas_src>
import functools

import jax
import jax.numpy as jnp
from jax import lax
from jax.experimental import pallas as pl
from jax.experimental.pallas import tpu as pltpu


# ----------------------------------------------------------------------------
# Fused kernel: conv matmul + GroupNorm(no affine) + Tanh + HardSwish
#               + Residual + LogSumExp over channels
# ----------------------------------------------------------------------------
def _fused_conv_post_kernel(p_ref, w_ref, b_ref, gmask_ref, lmask_ref, o_ref,
                            *, tb, eps, inv_cnt):
    # p_ref:     (TB, K, S_pad) im2col patches for TB batch samples
    # w_ref:     (C, K)  reshaped conv weight (f32 or bf16)
    # b_ref:     (C, 1)  bias (f32)
    # gmask_ref: (C, G)  0/1 group-membership mask (f32)
    # lmask_ref: (1, S_pad) 1.0 on real spatial columns, 0.0 on padding
    # o_ref:     (TB, 1, S_pad) logsumexp output
    w2 = w_ref[...]                                       # (C, K)
    b = b_ref[...]                                        # (C, 1)
    gm = gmask_ref[...]                                   # (C, G)
    lm = lmask_ref[...]                                   # (1, S_pad)

    for t in range(tb):                                   # static, tiny
        patches = p_ref[t]                                # (K, S_pad)

        # Conv as lane-dense matmul: (C,K)@(K,S_pad) -> (C,S_pad), f32 accum.
        conv = jnp.dot(w2, patches, preferred_element_type=jnp.float32) + b

        # --- GroupNorm (no affine), stats masked to valid lanes -----------
        cm = conv * lm                                    # zero padded lanes
        ch_sum = jnp.sum(cm, axis=1, keepdims=True)       # (C, 1)
        ch_sq = jnp.sum(cm * conv, axis=1, keepdims=True) # (C, 1)

        grp_sum = jnp.sum(ch_sum * gm, axis=0, keepdims=True)   # (1, G)
        grp_sq = jnp.sum(ch_sq * gm, axis=0, keepdims=True)     # (1, G)
        gmean = grp_sum * inv_cnt
        gvar = grp_sq * inv_cnt - gmean * gmean
        ginv = lax.rsqrt(gvar + eps)                      # (1, G)

        mean_c = jnp.sum(gm * gmean, axis=1, keepdims=True)     # (C, 1)
        inv_c = jnp.sum(gm * ginv, axis=1, keepdims=True)       # (C, 1)

        x_norm = (conv - mean_c) * inv_c

        # --- Tanh + HardSwish (clip dropped: tanh in [-1,1] => no-op) -----
        th = jnp.tanh(x_norm)
        hs = th * (th + 3.0) * (1.0 / 6.0)

        # --- Residual + LogSumExp over channels (sublane axis) ------------
        res = conv + hs
        mx = jnp.max(res, axis=0, keepdims=True)          # (1, S_pad)
        lse = mx + jnp.log(jnp.sum(jnp.exp(res - mx), axis=0, keepdims=True))
        o_ref[t] = lse


def _pick_tb(n, max_tb=8):
    """Largest divisor of n (<= max_tb) that keeps the grid >= 2 steps."""
    tb = 1
    for cand in range(1, min(n, max_tb) + 1):
        if n % cand == 0 and n // cand >= 2:
            tb = cand
    return tb


def model_forward(x, conv_w, conv_b, groups, eps=1e-5,
                  compute_dtype=jnp.float32):
    """x: (N, Cin, H, W), conv_w: (Cout, Cin, KH, KW), conv_b: (Cout,).

    Returns logsumexp over channels of (conv + hardswish(tanh(groupnorm(conv)))),
    shape (N, 1, OH, OW).
    """
    N, Cin, H, W = x.shape
    Cout, _, KH, KW = conv_w.shape
    OH, OW = H - KH + 1, W - KW + 1
    S = OH * OW
    K = Cin * KH * KW
    S_pad = ((S + 127) // 128) * 128

    # im2col glue (XLA) in the transposed (N, K, S) layout the kernel consumes
    # directly (spatial on lanes, channels-of-patch on sublanes).
    cols = [x[:, :, i:i + OH, j:j + OW] for i in range(KH) for j in range(KW)]
    patches = jnp.stack(cols, axis=2).reshape(N, K, S)    # (N, K, S)
    if S_pad != S:
        patches = jnp.pad(patches, ((0, 0), (0, 0), (0, S_pad - S)))
    patches = patches.astype(compute_dtype)

    w2 = conv_w.reshape(Cout, K).astype(compute_dtype)    # (Cout, K)
    b2 = conv_b.reshape(Cout, 1).astype(jnp.float32)      # (Cout, 1)

    cg = Cout // groups
    gmask = (jnp.arange(Cout)[:, None] // cg
             == jnp.arange(groups)[None, :]).astype(jnp.float32)   # (Cout, G)
    lmask = (jnp.arange(S_pad)[None, :] < S).astype(jnp.float32)    # (1, S_pad)

    TB = _pick_tb(N)
    grid = (N // TB,)

    # VMEM budget (v7x: only 64 MiB physical): double-buffered patch blocks,
    # resident weights/masks, f32 temporaries, output buffers.
    item = jnp.dtype(compute_dtype).itemsize
    footprint = (2 * TB * K * S_pad * item          # patches (double-buffered)
                 + 2 * Cout * K * item              # weights
                 + 2 * (Cout + Cout * groups + S_pad) * 4
                 + 2 * TB * S_pad * 4               # output
                 + 8 * Cout * S_pad * 4)            # live f32 temporaries
    vmem_limit = int(min(64 * 2 ** 20, max(8 * 2 ** 20, 2 * footprint)))

    cost = pl.CostEstimate(
        flops=2 * N * Cout * K * S_pad,
        transcendentals=N * (2 * Cout * S_pad + S_pad),   # tanh + exp (+ log)
        bytes_accessed=(patches.size * item + w2.size * item
                        + (b2.size + gmask.size + lmask.size) * 4
                        + N * S_pad * 4),
    )

    out = pl.pallas_call(
        functools.partial(_fused_conv_post_kernel, tb=TB, eps=eps,
                          inv_cnt=1.0 / float(cg * S)),
        out_shape=jax.ShapeDtypeStruct((N, 1, S_pad), jnp.float32),
        grid=grid,
        in_specs=[
            pl.BlockSpec((TB, K, S_pad), lambda n: (n, 0, 0)),    # patches
            pl.BlockSpec((Cout, K), lambda n: (0, 0)),            # weights
            pl.BlockSpec((Cout, 1), lambda n: (0, 0)),            # bias
            pl.BlockSpec((Cout, groups), lambda n: (0, 0)),       # group mask
            pl.BlockSpec((1, S_pad), lambda n: (0, 0)),           # lane mask
        ],
        out_specs=pl.BlockSpec((TB, 1, S_pad), lambda n: (n, 0, 0)),
        compiler_params=pltpu.CompilerParams(
            dimension_semantics=("parallel",),
            vmem_limit_bytes=vmem_limit),
        cost_estimate=cost,
    )(patches, w2, b2, gmask, lmask)

    return out[:, :, :S].reshape(N, 1, OH, OW)


# ----------------------------------------------------------------------------
# Pure-JAX reference for verification
# ----------------------------------------------------------------------------
def reference_forward(x, conv_w, conv_b, groups, eps=1e-5):
    x_conv = lax.conv_general_dilated(
        x, conv_w, window_strides=(1, 1), padding="VALID",
        dimension_numbers=("NCHW", "OIHW", "NCHW"),
    ) + conv_b.reshape(1, -1, 1, 1)
    N, C, H, W = x_conv.shape
    xg = x_conv.reshape(N, groups, C // groups, H, W)
    mean = xg.mean(axis=(2, 3, 4), keepdims=True)
    var = (xg * xg).mean(axis=(2, 3, 4), keepdims=True) - mean * mean
    x_norm = ((xg - mean) / jnp.sqrt(var + eps)).reshape(N, C, H, W)
    t = jnp.tanh(x_norm)
    hs = t * jnp.clip(t + 3.0, 0.0, 6.0) / 6.0
    res = x_conv + hs
    return jax.scipy.special.logsumexp(res, axis=1, keepdims=True)


if __name__ == "__main__":
    def run_case(N, Cin, H, W, Cout, Ksz, groups, eps, compute_dtype, atol, rtol):
        key = jax.random.PRNGKey(0)
        kx, kw, kb = jax.random.split(key, 3)
        x = jax.random.normal(kx, (N, Cin, H, W), dtype=jnp.float32)
        fan_in = Cin * Ksz * Ksz
        bound = 1.0 / (fan_in ** 0.5)
        conv_w = jax.random.uniform(kw, (Cout, Cin, Ksz, Ksz), jnp.float32, -bound, bound)
        conv_b = jax.random.uniform(kb, (Cout,), jnp.float32, -bound, bound)

        fwd = jax.jit(functools.partial(model_forward, groups=groups, eps=eps,
                                        compute_dtype=compute_dtype))
        out = jax.block_until_ready(fwd(x, conv_w, conv_b))
        ref = jax.block_until_ready(reference_forward(x, conv_w, conv_b, groups, eps))
        assert out.shape == (N, 1, H - Ksz + 1, W - Ksz + 1), out.shape
        err = float(jnp.max(jnp.abs(out - ref)))
        assert jnp.allclose(out, ref, rtol=rtol, atol=atol), err

    # Case 1: spec shapes (batch=2, in_channels=4, out_channels=8, 16x16, k=3,
    # groups=4), f32 MXU operands, TB=1 so grid=2 keeps both v7x TCs busy.
    run_case(2, 4, 16, 16, 8, 3, 4, 1e-5, jnp.float32, atol=1e-4, rtol=1e-4)

    # Case 2: larger batch exercises TB=4 samples per grid step and bf16 MXU
    # operands (f32 accumulation), with a correspondingly looser tolerance.
    run_case(8, 4, 16, 16, 8, 3, 4, 1e-5, jnp.bfloat16, atol=3e-2, rtol=3e-2)

    print("KERNEL_OK")
</pallas_src>

<mosaic_0001>
module attributes {stable_mosaic.version = 11 : i64} {
  func.func @_fused_conv_post_kernel(%arg0: i32, %arg1: memref<1x36x256xf32, #tpu.memory_space<vmem>>, %arg2: memref<8x36xf32, #tpu.memory_space<vmem>>, %arg3: memref<8x1xf32, #tpu.memory_space<vmem>>, %arg4: memref<8x4xf32, #tpu.memory_space<vmem>>, %arg5: memref<1x256xf32, #tpu.memory_space<vmem>>, %arg6: memref<1x1x256xf32, #tpu.memory_space<vmem>>) attributes {dimension_semantics = [#tpu.dimension_semantics<parallel>], iteration_bounds = array<i64: 2>, scalar_prefetch = 0 : i64, scratch_operands = 0 : i64, tpu.core_type = #tpu.core_type<tc>, window_params = [{transform_indices = @transform_0, window_bounds = array<i64: 1, 36, 256>}, {pipeline_mode = #tpu.pipeline_mode<synchronous>, transform_indices = @transform_1, window_bounds = array<i64: 8, 36>}, {pipeline_mode = #tpu.pipeline_mode<synchronous>, transform_indices = @transform_2, window_bounds = array<i64: 8, 1>}, {pipeline_mode = #tpu.pipeline_mode<synchronous>, transform_indices = @transform_3, window_bounds = array<i64: 8, 4>}, {pipeline_mode = #tpu.pipeline_mode<synchronous>, transform_indices = @transform_4, window_bounds = array<i64: 1, 256>}, {transform_indices = @transform_5, window_bounds = array<i64: 1, 1, 256>}]} {
    %c0 = arith.constant 0 : index
    %c0_0 = arith.constant 0 : index
    %0 = vector.load %arg2[%c0, %c0_0] : memref<8x36xf32, #tpu.memory_space<vmem>>, vector<8x36xf32>
    %c0_1 = arith.constant 0 : index
    %c0_2 = arith.constant 0 : index
    %1 = vector.load %arg3[%c0_1, %c0_2] : memref<8x1xf32, #tpu.memory_space<vmem>>, vector<8x1xf32>
    %c0_3 = arith.constant 0 : index
    %c0_4 = arith.constant 0 : index
    %2 = vector.load %arg4[%c0_3, %c0_4] : memref<8x4xf32, #tpu.memory_space<vmem>>, vector<8x4xf32>
    %c0_5 = arith.constant 0 : index
    %c0_6 = arith.constant 0 : index
    %3 = vector.load %arg5[%c0_5, %c0_6] : memref<1x256xf32, #tpu.memory_space<vmem>>, vector<1x256xf32>
    %c0_7 = arith.constant 0 : index
    %c0_8 = arith.constant 0 : index
    %c0_9 = arith.constant 0 : index
    %4 = vector.load %arg1[%c0_7, %c0_8, %c0_9] : memref<1x36x256xf32, #tpu.memory_space<vmem>>, vector<1x36x256xf32>
    %5 = vector.shape_cast %4 : vector<1x36x256xf32> to vector<36x256xf32>
    %cst = arith.constant dense<0.000000e+00> : vector<8x256xf32>
    %6 = tpu.matmul %0, %5, %cst {dimension_numbers = #tpu.dot_dimension_numbers<[1], [0], [0], [1], [0, 0, 1, 1], [], []>} : vector<8x36xf32>, vector<36x256xf32>, vector<8x256xf32> -> vector<8x256xf32>
    %7 = vector.broadcast %1 : vector<8x1xf32> to vector<8x256xf32>
    %8 = arith.addf %6, %7 : vector<8x256xf32>
    %9 = vector.broadcast %3 : vector<1x256xf32> to vector<8x256xf32>
    %10 = arith.mulf %8, %9 : vector<8x256xf32>
    %cst_10 = arith.constant dense<0.000000e+00> : vector<8xf32>
    %11 = vector.multi_reduction <add>, %10, %cst_10 [1] : vector<8x256xf32> to vector<8xf32>
    %12 = vector.shape_cast %11 : vector<8xf32> to vector<8x1xf32>
    %13 = arith.mulf %10, %8 : vector<8x256xf32>
    %cst_11 = arith.constant dense<0.000000e+00> : vector<8xf32>
    %14 = vector.multi_reduction <add>, %13, %cst_11 [1] : vector<8x256xf32> to vector<8xf32>
    %15 = vector.shape_cast %14 : vector<8xf32> to vector<8x1xf32>
    %16 = vector.broadcast %12 : vector<8x1xf32> to vector<8x4xf32>
    %17 = arith.mulf %16, %2 : vector<8x4xf32>
    %cst_12 = arith.constant dense<0.000000e+00> : vector<4xf32>
    %18 = vector.multi_reduction <add>, %17, %cst_12 [0] : vector<8x4xf32> to vector<4xf32>
    %19 = vector.shape_cast %18 : vector<4xf32> to vector<1x4xf32>
    %20 = vector.broadcast %15 : vector<8x1xf32> to vector<8x4xf32>
    %21 = arith.mulf %20, %2 : vector<8x4xf32>
    %cst_13 = arith.constant dense<0.000000e+00> : vector<4xf32>
    %22 = vector.multi_reduction <add>, %21, %cst_13 [0] : vector<8x4xf32> to vector<4xf32>
    %23 = vector.shape_cast %22 : vector<4xf32> to vector<1x4xf32>
    %cst_14 = arith.constant 0.00255102036 : f32
    %24 = vector.broadcast %cst_14 : f32 to vector<1x4xf32>
    %25 = arith.mulf %19, %24 : vector<1x4xf32>
    %cst_15 = arith.constant 0.00255102036 : f32
    %26 = vector.broadcast %cst_15 : f32 to vector<1x4xf32>
    %27 = arith.mulf %23, %26 : vector<1x4xf32>
    %28 = arith.mulf %25, %25 : vector<1x4xf32>
    %29 = arith.subf %27, %28 : vector<1x4xf32>
    %cst_16 = arith.constant 9.99999974E-6 : f32
    %30 = vector.broadcast %cst_16 : f32 to vector<1x4xf32>
    %31 = arith.addf %29, %30 : vector<1x4xf32>
    %32 = math.rsqrt %31 : vector<1x4xf32>
    %33 = vector.broadcast %25 : vector<1x4xf32> to vector<8x4xf32>
    %34 = arith.mulf %2, %33 : vector<8x4xf32>
    %cst_17 = arith.constant dense<0.000000e+00> : vector<8xf32>
    %35 = vector.multi_reduction <add>, %34, %cst_17 [1] : vector<8x4xf32> to vector<8xf32>
    %36 = vector.shape_cast %35 : vector<8xf32> to vector<8x1xf32>
    %37 = vector.broadcast %32 : vector<1x4xf32> to vector<8x4xf32>
    %38 = arith.mulf %2, %37 : vector<8x4xf32>
    %cst_18 = arith.constant dense<0.000000e+00> : vector<8xf32>
    %39 = vector.multi_reduction <add>, %38, %cst_18 [1] : vector<8x4xf32> to vector<8xf32>
    %40 = vector.shape_cast %39 : vector<8xf32> to vector<8x1xf32>
    %41 = vector.broadcast %36 : vector<8x1xf32> to vector<8x256xf32>
    %42 = arith.subf %8, %41 : vector<8x256xf32>
    %43 = vector.broadcast %40 : vector<8x1xf32> to vector<8x256xf32>
    %44 = arith.mulf %42, %43 : vector<8x256xf32>
    %45 = math.tanh %44 : vector<8x256xf32>
    %cst_19 = arith.constant 3.000000e+00 : f32
    %46 = vector.broadcast %cst_19 : f32 to vector<8x256xf32>
    %47 = arith.addf %45, %46 : vector<8x256xf32>
    %48 = arith.mulf %45, %47 : vector<8x256xf32>
    %cst_20 = arith.constant 0.166666672 : f32
    %49 = vector.broadcast %cst_20 : f32 to vector<8x256xf32>
    %50 = arith.mulf %48, %49 : vector<8x256xf32>
    %51 = arith.addf %8, %50 : vector<8x256xf32>
    %cst_21 = arith.constant dense<0xFF800000> : vector<256xf32>
    %52 = vector.multi_reduction <maximumf>, %51, %cst_21 [0] : vector<8x256xf32> to vector<256xf32>
    %53 = vector.shape_cast %52 : vector<256xf32> to vector<1x256xf32>
    %54 = vector.broadcast %53 : vector<1x256xf32> to vector<8x256xf32>
    %55 = arith.subf %51, %54 : vector<8x256xf32>
    %56 = math.exp %55 : vector<8x256xf32>
    %cst_22 = arith.constant dense<0.000000e+00> : vector<256xf32>
    %57 = vector.multi_reduction <add>, %56, %cst_22 [0] : vector<8x256xf32> to vector<256xf32>
    %58 = vector.shape_cast %57 : vector<256xf32> to vector<1x256xf32>
    %59 = math.log %58 : vector<1x256xf32>
    %60 = arith.addf %53, %59 : vector<1x256xf32>
    %c0_23 = arith.constant 0 : index
    %c0_24 = arith.constant 0 : index
    %c0_25 = arith.constant 0 : index
    %61 = vector.load %arg6[%c0_23, %c0_24, %c0_25] : memref<1x1x256xf32, #tpu.memory_space<vmem>>, vector<1x1x256xf32>
    %62 = vector.shape_cast %61 : vector<1x1x256xf32> to vector<1x256xf32>
    %63 = vector.shape_cast %60 : vector<1x256xf32> to vector<1x1x256xf32>
    tpu.vector_store %arg6[%c0_23, %c0_24, %c0_25], %63 {strides = array<i32>} : memref<1x1x256xf32, #tpu.memory_space<vmem>>, vector<1x1x256xf32>,
    return
  }
  func.func @transform_0(%arg0: i32) -> (i32, i32, i32) {
    %c0_i32 = arith.constant 0 : i32
    %c0_i32_0 = arith.constant 0 : i32
    %c0_i32_1 = arith.constant 0 : i32
    return %arg0, %c0_i32, %c0_i32_0 : i32, i32, i32
  }
  func.func @transform_1(%arg0: i32) -> (i32, i32) {
    %c0_i32 = arith.constant 0 : i32
    %c0_i32_0 = arith.constant 0 : i32
    %c0_i32_1 = arith.constant 0 : i32
    return %c0_i32, %c0_i32_0 : i32, i32
  }
  func.func @transform_2(%arg0: i32) -> (i32, i32) {
    %c0_i32 = arith.constant 0 : i32
    %c0_i32_0 = arith.constant 0 : i32
    %c0_i32_1 = arith.constant 0 : i32
    return %c0_i32, %c0_i32_0 : i32, i32
  }
  func.func @transform_3(%arg0: i32) -> (i32, i32) {
    %c0_i32 = arith.constant 0 : i32
    %c0_i32_0 = arith.constant 0 : i32
    %c0_i32_1 = arith.constant 0 : i32
    return %c0_i32, %c0_i32_0 : i32, i32
  }
  func.func @transform_4(%arg0: i32) -> (i32, i32) {
    %c0_i32 = arith.constant 0 : i32
    %c0_i32_0 = arith.constant 0 : i32
    %c0_i32_1 = arith.constant 0 : i32
    return %c0_i32, %c0_i32_0 : i32, i32
  }
  func.func @transform_5(%arg0: i32) -> (i32, i32, i32) {
    %c0_i32 = arith.constant 0 : i32
    %c0_i32_0 = arith.constant 0 : i32
    %c0_i32_1 = arith.constant 0 : i32
    return %arg0, %c0_i32, %c0_i32_0 : i32, i32, i32
  }
}

</mosaic_0001>

<llo_original>
// kernel: model_forward.1
$region0: #{model_forward.1}
  #allocation0 [shape = 'u32[]', space=smem, size = 0x4, offset = 0x4, fixed_abs, tag = 'smem constant byte address 0x4 - core index']
  #allocation1 [shape = 'u32[144,128]{1,0:T(1,128)}', space=vmem, size = 0x12000, scoped, tag = 'internal scratch']
  %s0 = inlined_call_operand.vmem [shape: f32[2,36,256], index: 0, kind: input, shape index: {}]
  %s1 = inlined_call_operand.vmem [shape: f32[8,36], index: 1, kind: input, shape index: {}]
  %s2 = inlined_call_operand.vmem [shape: f32[8,1], index: 2, kind: input, shape index: {}]
  %s3 = inlined_call_operand.vmem [shape: f32[8,4], index: 3, kind: input, shape index: {}]
  %s4 = inlined_call_operand.vmem [shape: f32[1,256], index: 4, kind: input, shape index: {}]
  %s5 = inlined_call_operand.vmem [shape: f32[2,1,256], index: 5, kind: output, shape index: {}]
  %s6 = sld [smem:[#allocation0]]
  $region53: #{model_forward.1} parent=0
    _
  %s8 = ssub.s32 1, %s6
  %s9 = scalar_select 0, %s8, %s6
  loop: start=0, step=1, limit=4
  $region2: #{model_forward.1} parent=0 // loop_pre_header
    _
  $region3: #{model_forward.1} parent=0 // loop_header
    %s11 = sphi 0, %s15
    %p12 = scmp.ge.s32.totalorder %s11, 4
    %s21 = sphi 0, %s23
    %s24 = sphi 0, %s21
    %s25 = sphi 0, %s24
    %s41 = sphi 0, %s25
    %s45 = sphi 0, %s45
    %s47 = sphi 0, %s45
    %s48 = sphi 0, %s47
    %s62 = sphi 0, %s48
    %s66 = sphi 0, %s66
    %s68 = sphi 0, %s66
    %s69 = sphi 0, %s68
    %s83 = sphi 0, %s69
    %s87 = sphi 0, %s87
    %s89 = sphi 0, %s87
    %s90 = sphi 0, %s89
    %s104 = sphi 0, %s90
    %s108 = sphi 0, %s108
    %s110 = sphi 0, %s108
    %s111 = sphi 0, %s110
    %s125 = sphi 0, %s111
    %s131 = sphi 0, %s133
    %s134 = sphi 0, %s131
    %s135 = sphi 0, %s134
    %s151 = sphi 0, %s135
  $region4: #{model_forward.1} parent=0 // loop_header_branch
    %14 = sbr.rel (%p12) target = $region8
  $region5: #{model_forward.1} parent=0 // loop_body
    %s16 = ssub.s32 %s11, 1
    %s17 = ssub.s32 %s11, 2
    %s18 = sadd.s32 %s11, 1
    %s19 = ssub.s32 %s11, %s18
    %p20 = scmp.eq.s32.totalorder %s19, 0
    %s22 = sadd.s32 %s21, 1
    %s23 = scalar_select %p20, %s21, %s22
    %p26 = pneg %p20
    %p27 = scmp.eq.s32.totalorder %s11, 1
    %p28 = por %p26, %p27
    %p29 = scmp.ne.s32.totalorder %s21, %s24
    %p30 = scmp.eq.s32.totalorder %s11, 0
    %p31 = por %p29, %p30
    %p32 = scmp.ne.s32.totalorder %s21, %s24
    %p33 = scmp.eq.s32.totalorder %s16, 1
    %p34 = por %p32, %p33
    %p35 = scmp.ne.s32.totalorder %s24, %s25
    %p36 = scmp.eq.s32.totalorder %s16, 0
    %p37 = por %p35, %p36
    %p38 = scmp.ne.s32.totalorder %s24, %s25
    %p39 = scmp.eq.s32.totalorder %s17, 1
    %p40 = por %p38, %p39
    %p42 = scmp.ne.s32.totalorder %s25, %s41
    %p43 = scmp.eq.s32.totalorder %s17, 0
    %p44 = por %p42, %p43
    %s46 = sadd.s32 %s45, 1
    %p49 = scmp.eq.s32.totalorder %s11, 1
    %p50 = scmp.ne.s32.totalorder %s45, %s47
    %p51 = scmp.eq.s32.totalorder %s11, 0
    %p52 = por %p50, %p51
    %p53 = scmp.ne.s32.totalorder %s45, %s47
    %p54 = scmp.eq.s32.totalorder %s16, 1
    %p55 = por %p53, %p54
    %p56 = scmp.ne.s32.totalorder %s47, %s48
    %p57 = scmp.eq.s32.totalorder %s16, 0
    %p58 = por %p56, %p57
    %p59 = scmp.ne.s32.totalorder %s47, %s48
    %p60 = scmp.eq.s32.totalorder %s17, 1
    %p61 = por %p59, %p60
    %p63 = scmp.ne.s32.totalorder %s48, %s62
    %p64 = scmp.eq.s32.totalorder %s17, 0
    %p65 = por %p63, %p64
    %s67 = sadd.s32 %s66, 1
    %p70 = scmp.eq.s32.totalorder %s11, 1
    %p71 = scmp.ne.s32.totalorder %s66, %s68
    %p72 = scmp.eq.s32.totalorder %s11, 0
    %p73 = por %p71, %p72
    %p74 = scmp.ne.s32.totalorder %s66, %s68
    %p75 = scmp.eq.s32.totalorder %s16, 1
    %p76 = por %p74, %p75
    %p77 = scmp.ne.s32.totalorder %s68, %s69
    %p78 = scmp.eq.s32.totalorder %s16, 0
    %p79 = por %p77, %p78
    %p80 = scmp.ne.s32.totalorder %s68, %s69
    %p81 = scmp.eq.s32.totalorder %s17, 1
    %p82 = por %p80, %p81
    %p84 = scmp.ne.s32.totalorder %s69, %s83
    %p85 = scmp.eq.s32.totalorder %s17, 0
    %p86 = por %p84, %p85
    %s88 = sadd.s32 %s87, 1
    %p91 = scmp.eq.s32.totalorder %s11, 1
    %p92 = scmp.ne.s32.totalorder %s87, %s89
    %p93 = scmp.eq.s32.totalorder %s11, 0
    %p94 = por %p92, %p93
    %p95 = scmp.ne.s32.totalorder %s87, %s89
    %p96 = scmp.eq.s32.totalorder %s16, 1
    %p97 = por %p95, %p96
    %p98 = scmp.ne.s32.totalorder %s89, %s90
    %p99 = scmp.eq.s32.totalorder %s16, 0
    %p100 = por %p98, %p99
    %p101 = scmp.ne.s32.totalorder %s89, %s90
    %p102 = scmp.eq.s32.totalorder %s17, 1
    %p103 = por %p101, %p102
    %p105 = scmp.ne.s32.totalorder %s90, %s104
    %p106 = scmp.eq.s32.totalorder %s17, 0
    %p107 = por %p105, %p106
    %s109 = sadd.s32 %s108, 1
    %p112 = scmp.eq.s32.totalorder %s11, 1
    %p113 = scmp.ne.s32.totalorder %s108, %s110
    %p114 = scmp.eq.s32.totalorder %s11, 0
    %p115 = por %p113, %p114
    %p116 = scmp.ne.s32.totalorder %s108, %s110
    %p117 = scmp.eq.s32.totalorder %s16, 1
    %p118 = por %p116, %p117
    %p119 = scmp.ne.s32.totalorder %s110, %s111
    %p120 = scmp.eq.s32.totalorder %s16, 0
    %p121 = por %p119, %p120
    %p122 = scmp.ne.s32.totalorder %s110, %s111
    %p123 = scmp.eq.s32.totalorder %s17, 1
    %p124 = por %p122, %p123
    %p126 = scmp.ne.s32.totalorder %s111, %s125
    %p127 = scmp.eq.s32.totalorder %s17, 0
    %p128 = por %p126, %p127
    %s129 = ssub.s32 %s11, %s18
    %p130 = scmp.eq.s32.totalorder %s129, 0
    %s132 = sadd.s32 %s131, 1
    %s133 = scalar_select %p130, %s131, %s132
    %p136 = pneg %p130
    %p137 = scmp.eq.s32.totalorder %s11, 1
    %p138 = por %p136, %p137
    %p139 = scmp.ne.s32.totalorder %s131, %s134
    %p140 = scmp.eq.s32.totalorder %s11, 0
    %p141 = por %p139, %p140
    %p142 = scmp.ne.s32.totalorder %s131, %s134
    %p143 = scmp.eq.s32.totalorder %s16, 1
    %p144 = por %p142, %p143
    %p145 = scmp.ne.s32.totalorder %s134, %s135
    %p146 = scmp.eq.s32.totalorder %s16, 0
    %p147 = por %p145, %p146
    %p148 = scmp.ne.s32.totalorder %s134, %s135
    %p149 = scmp.eq.s32.totalorder %s17, 1
    %p150 = por %p148, %p149
    %p152 = scmp.ne.s32.totalorder %s135, %s151
    %p153 = scmp.eq.s32.totalorder %s17, 0
    %p154 = por %p152, %p153
    %p155 = scmp.le.s32.totalorder 1, %s11
    %p156 = scmp.lt.s32.totalorder %s11, 3
    %p157 = pnand %p155, %p156
    %p158 = pneg %p157
    // Predicated region
    $region9: #{model_forward.1} parent=5 // pred_check
      _
    $region10: #{model_forward.1} parent=5 // pred_check_branch
      %160 = sbr.rel (%p157) target = $region12
    $region11: #{model_forward.1} parent=5 // pred_region
      %s161 = ssub.s32 %s11, 1
      // Predicated region
      $region13: #{model_forward.1} parent=11 // pred_check
        %p162 = pneg %p58
      $region14: #{model_forward.1} parent=11 // pred_check_branch
        %164 = sbr.rel (%p162) target = $region16
      $region15: #{model_forward.1} parent=11 // pred_region
        _
      $region16: #{model_forward.1} parent=11 // pred_fallthru
        _
      // Predicated region
      $region17: #{model_forward.1} parent=11 // pred_check
        %p165 = pneg %p79
      $region18: #{model_forward.1} parent=11 // pred_check_branch
        %167 = sbr.rel (%p165) target = $region20
      $region19: #{model_forward.1} parent=11 // pred_region
        _
      $region20: #{model_forward.1} parent=11 // pred_fallthru
        _
      // Predicated region
      $region21: #{model_forward.1} parent=11 // pred_check
        %p168 = pneg %p100
      $region22: #{model_forward.1} parent=11 // pred_check_branch
        %170 = sbr.rel (%p168) target = $region24
      $region23: #{model_forward.1} parent=11 // pred_region
        _
      $region24: #{model_forward.1} parent=11 // pred_fallthru
        _
      // Predicated region
      $region25: #{model_forward.1} parent=11 // pred_check
        %p171 = pneg %p121
      $region26: #{model_forward.1} parent=11 // pred_check_branch
        %173 = sbr.rel (%p171) target = $region28
      $region27: #{model_forward.1} parent=11 // pred_region
        _
      $region28: #{model_forward.1} parent=11 // pred_fallthru
        _
    $region12: #{model_forward.1} parent=5 // pred_fallthru
      _
    %p174 = scmp.lt.s32.totalorder %s11, 2
    // Predicated region
    $region29: #{model_forward.1} parent=5 // pred_check
      %p175 = pneg %p174
    $region30: #{model_forward.1} parent=5 // pred_check_branch
      %177 = sbr.rel (%p175) target = $region32
    $region31: #{model_forward.1} parent=5 // pred_region
      // Predicated region
      $region33: #{model_forward.1} parent=31 // pred_check
        %p178 = pneg %p31
      $region34: #{model_forward.1} parent=31 // pred_check_branch
        %180 = sbr.rel (%p178) target = $region36
      $region35: #{model_forward.1} parent=31 // pred_region
        %p181 = scmp.lt.s32.totalorder %s11, 1
        %s182 = scalar_select %p181, %s11, 1
        %s183 = smul.addr %s182, 10
        %s184 = smul.addr %s183, 8
        %s185 = scalar_lea.vmem %s0, %s184
      $region36: #{model_forward.1} parent=31 // pred_fallthru
        _
    $region32: #{model_forward.1} parent=5 // pred_fallthru
      _
    %p186 = scmp.le.s32.totalorder 1, %s11
    %p187 = scmp.lt.s32.totalorder %s11, 3
    %p188 = pnand %p186, %p187
    %p189 = pneg %p188
    // Predicated region
    $region37: #{model_forward.1} parent=5 // pred_check
      _
    $region38: #{model_forward.1} parent=5 // pred_check_branch
      %191 = sbr.rel (%p188) target = $region40
    $region39: #{model_forward.1} parent=5 // pred_region
      %s192 = ssub.s32 %s11, 1
      %p193 = scmp.lt.s32.totalorder %s16, 1
      %s194 = scalar_select %p193, %s16, 1
      %s195 = smul.addr %s194, 10
      %s196 = smul.addr %s195, 8
      %s197 = scalar_lea.vmem %s0, %s196
      %p198 = pneg %p37
      %p199 = pneg %p34
      %p200 = pneg %p58
      %p201 = pneg %p55
      %p202 = pneg %p79
      %p203 = pneg %p76
      %p204 = pneg %p100
      %p205 = pneg %p97
      %p206 = pneg %p121
      %p207 = pneg %p118
      %p208 = pneg %p147
      %p209 = pneg %p144
      %p210 = scmp.lt.s32.totalorder %s16, 1
      %s211 = scalar_select %p210, %s16, 1
      %s212 = smul.addr %s211, 2
      %s213 = scalar_lea.vmem %s5, %s212
      %p214 = scmp.lt.s32.totalorder %s16, 1
      %s215 = scalar_select %p214, %s16, 1
      %s216 = smul.addr %s215, 10
      %s217 = smul.addr %s216, 8
      %s218 = scalar_lea.vmem %s0, %s217
      %p219 = scmp.lt.s32.totalorder %s16, 1
      %s220 = scalar_select %p219, %s16, 1
      %s221 = smul.addr %s220, 2
      %s222 = scalar_lea.vmem %s5, %s221
      %v223 = vld [vmem:[%s1] sm:$0xff]
      %v224 = vld [vmem:[%s2] sm:$0xff]
      %v225 = vld [vmem:[%s3] sm:$0xff]
      %v226 = vld [vmem:[%s4] sm:$0x3]
      %v227 = vld [vmem:[%s218] sm:$0xff]
      %v228 = vld [vmem:[%s218 + $0x8] sm:$0xff]
      %v229 = vld [vmem:[%s218 + $0x10] sm:$0xff]
      %v230 = vld [vmem:[%s218 + $0x18] sm:$0xff]
      %v231 = vld [vmem:[%s218 + $0x20] sm:$0xff]
      %v232 = vld [vmem:[%s218 + $0x28] sm:$0xff]
      %v233 = vld [vmem:[%s218 + $0x30] sm:$0xff]
      %v234 = vld [vmem:[%s218 + $0x38] sm:$0xff]
      %v235 = vld [vmem:[%s218 + $0x40] sm:$0xf]
      %v236 = vld [vmem:[%s218 + $0x48] sm:$0xf]
      %238 = vset.pattern.permute.xlu0 0
      %239 = vperm.xlu0 %238, %v224
      %v240 = vpop.permute.xlu0 %239
      %vm242 = vcmask 293888
      %v244 = vsel %vm242, %v223, 0
      %vm246 = vcmask 1043456
      %v248 = vsel %vm246, %v235, 0
      %v251 = vsel %vm246, %v236, 0
      %253 = vmatprep.subr.mxu0 0.0
      %254 = vmatpush1.msra.mxu0 0.0
      %255 = vmatprep.subr.mxu0 0.0
      %256 = vmatpush1.msra.mxu0 0.0
      %257 = vmatprep.subr.mxu0 0.0
      %258 = vmatpush1.msra.mxu0 0.0
      %259 = vmatprep.subr.mxu0 0.0
      %260 = vmatpush1.msra.mxu0 0.0
      %261 = vmatprep.subr.mxu0 0.0
      %262 = vmatpush1.msra.mxu0 0.0
      %263 = vmatprep.subr.mxu0 0.0
      %264 = vmatpush1.msra.mxu0 0.0
      %265 = vmatprep.subr.mxu0 0.0
      %266 = vmatpush1.msra.mxu0 0.0
      %267 = vmatprep.subr.mxu0 0.0
      %268 = vmatpush1.msra.mxu0 0.0
      %269 = vmatprep.subr.mxu0 0.0
      %270 = vmatpush1.msra.mxu0 0.0
      %271 = vmatprep.subr.mxu0 0.0
      %272 = vmatpush1.msra.mxu0 0.0
      %273 = vmatprep.subr.mxu0 0.0
      %274 = vmatpush1.msra.mxu0 0.0
      %275 = vmatprep.subr.mxu0 %v251
      %276 = vmatpush1.msra.mxu0 %v248
      %277 = vmatprep.subr.mxu0 %v234
      %278 = vmatpush1.msra.mxu0 %v233
      %279 = vmatprep.subr.mxu0 %v232
      %280 = vmatpush1.msra.mxu0 %v231
      %281 = vmatprep.subr.mxu0 %v230
      %282 = vmatpush1.msra.mxu0 %v229
      %283 = vmatprep.subr.mxu0 %v228
      %284 = vmatpush1.msra.mxu0 %v227
      %285 = vmatprep.subr.mxu0 0.0
      %286 = vmatpush2.msra.mxu0 0.0
      %287 = vmatprep.subr.mxu0 0.0
      %288 = vmatpush2.msra.mxu0 0.0
      %289 = vmatprep.subr.mxu0 0.0
      %290 = vmatpush2.msra.mxu0 0.0
      %291 = vmatprep.subr.mxu0 0.0
      %292 = vmatpush2.msra.mxu0 0.0
      %293 = vmatprep.subr.mxu0 0.0
      %294 = vmatpush2.msra.mxu0 0.0
      %295 = vmatprep.subr.mxu0 0.0
      %296 = vmatpush2.msra.mxu0 0.0
      %297 = vmatprep.subr.mxu0 0.0
      %298 = vmatpush2.msra.mxu0 0.0
      %299 = vmatprep.subr.mxu0 0.0
      %300 = vmatpush2.msra.mxu0 0.0
      %301 = vmatprep.subr.mxu0 0.0
      %302 = vmatpush2.msra.mxu0 0.0
      %303 = vmatprep.subr.mxu0 0.0
      %304 = vmatpush2.msra.mxu0 0.0
      %305 = vmatprep.subr.mxu0 0.0
      %306 = vmatpush2.msra.mxu0 0.0
      %307 = vmatprep.subr.mxu0 0.0
      %308 = vmatpush2.msra.mxu0 0.0
      %309 = vmatprep.subr.mxu0 0.0
      %310 = vmatpush2.msra.mxu0 0.0
      %311 = vmatprep.subr.mxu0 0.0
      %312 = vmatpush2.msra.mxu0 0.0
      %313 = vmatprep.subr.mxu0 0.0
      %314 = vmatpush2.msra.mxu0 0.0
      %315 = vmatprep.subr.mxu0 0.0
      %316 = vmatpush2.msra.mxu0 0.0
      %317 = vmatprep.mubr.f32.mxu0 0.0
      %318 = vmatmul.mubr.f32.gmra.mxu0 %v244
      %v319 = vpop.f32.mrf.mxu0
      %v320 = vadd.f32 %v240, %v319
      %v321 = vpop.f32.mrf.mxu0
      %v322 = vadd.f32 %v240, %v321
      %323 = vdwg.mxu0
      %v325 = vlaneseq
      %v326 = vshrl.u32 %v325, 7
      %v327 = vsub.s32 0, %v326
      %v328 = vrot.slane %v226, %v327
      %v329 = vlaneseq
      %v330 = vshrl.u32 %v329, 7
      %v331 = vsub.s32 1, %v330
      %v332 = vrot.slane %v226, %v331
      %v335 = vmul.f32 %v320, %v328
      %v336 = vmul.f32 %v322, %v332
      %v337 = vadd.f32 %v335, %v336
      %338 = vadd.xlane.f32.xlu0 %v337
      %v339 = vpop.xlane.xlu0 %338
      %v340 = vmul.f32 %v335, %v320
      %v341 = vmul.f32 %v336, %v322
      %v342 = vadd.f32 %v340, %v341
      %343 = vadd.xlane.f32.xlu0 %v342
      %v344 = vpop.xlane.xlu0 %343
      %v345 = vmul.f32 %v339, %v225
      %vm346 = vcmask 31744
      %v347 = vsel %vm346, %v345, 0.0
      %v348 = vrot.slane %v347, 4
      %v349 = vadd.f32 %v347, %v348
      %v350 = vrot.slane %v349, 2
      %v351 = vadd.f32 %v349, %v350
      %v352 = vrot.slane %v351, 1
      %v353 = vadd.f32 %v351, %v352
      %v354 = vmul.f32 %v344, %v225
      %v355 = vsel %vm346, %v354, 0.0
      %v356 = vrot.slane %v355, 4
      %v357 = vadd.f32 %v355, %v356
      %v358 = vrot.slane %v357, 2
      %v359 = vadd.f32 %v357, %v358
      %v360 = vrot.slane %v359, 1
      %v361 = vadd.f32 %v359, %v360
      %v362 = vmul.f32 %v353, 0.0025510204
      %v363 = vmul.f32 %v361, 0.0025510204
      %v364 = vmul.f32 %v362, %v362
      %v365 = vsub.f32 %v363, %v364
      %v366 = vadd.f32 %v365, 1e-05
      %v367 = vrsqrt.pop %v366
      %v368 = vmul.f32 %v225, %v362
      %v369 = vsel %vm346, %v368, 0.0
      %370 = vadd.xlane.f32.xlu0 %v369
      %v371 = vpop.xlane.xlu0 %370
      %v372 = vmul.f32 %v225, %v367
      %v373 = vsel %vm346, %v372, 0.0
      %374 = vadd.xlane.f32.xlu0 %v373
      %v375 = vpop.xlane.xlu0 %374
      %v376 = vsub.f32 %v320, %v371
      %v377 = vsub.f32 %v322, %v371
      %v378 = vmul.f32 %v376, %v375
      %v379 = vmul.f32 %v377, %v375
      %v380 = vtanh.pop %v378
      %v381 = vtanh.pop %v379
      %v382 = vadd.f32 %v380, 3.0
      %v383 = vadd.f32 %v381, 3.0
      %v384 = vmul.f32 %v380, %v382
      %v385 = vmul.f32 %v381, %v383
      %v386 = vmul.f32 %v384, 0.16666667
      %v387 = vmul.f32 %v385, 0.16666667
      %v388 = vadd.f32 %v320, %v386
      %v389 = vadd.f32 %v322, %v387
      %v390 = vrot.slane %v388, 4
      %v391 = vmax.f32 %v388, %v390
      %v392 = vrot.slane %v391, 2
      %v393 = vmax.f32 %v391, %v392
      %v394 = vrot.slane %v393, 1
      %v395 = vmax.f32 %v393, %v394
      %v396 = vrot.slane %v389, 4
      %v397 = vmax.f32 %v389, %v396
      %v398 = vrot.slane %v397, 2
      %v399 = vmax.f32 %v397, %v398
      %v400 = vrot.slane %v399, 1
      %v401 = vmax.f32 %v399, %v400
      %v402 = vsub.f32 %v388, %v395
      %v403 = vsub.f32 %v389, %v401
      %v404 = vmul.f32 %v402, 1.442695
      %v405 = vpow.pop %v404
      %v406 = vmul.f32 %v403, 1.442695
      %v407 = vpow.pop %v406
      %v408 = vrot.slane %v405, 4
      %v409 = vadd.f32 %v405, %v408
      %v410 = vrot.slane %v409, 2
      %v411 = vadd.f32 %v409, %v410
      %v412 = vrot.slane %v411, 1
      %v413 = vadd.f32 %v411, %v412
      %v414 = vrot.slane %v407, 4
      %v415 = vadd.f32 %v407, %v414
      %v416 = vrot.slane %v415, 2
      %v417 = vadd.f32 %v415, %v416
      %v418 = vrot.slane %v417, 1
      %v419 = vadd.f32 %v417, %v418
      %v420 = vlog2.pop %v413
      %v421 = vmul.f32 %v420, 0.6931472
      %v422 = vlog2.pop %v419
      %v423 = vmul.f32 %v422, 0.6931472
      %v424 = vadd.f32 %v395, %v421
      %v425 = vadd.f32 %v401, %v423
      %v428 = vcombine.low %v424, %v425
      %v430 = vunpack.c.l.s4 1966171168
      %v431 = vunpack.c.0.s8 %v430
      %v432 = vlaneseq
      %v433 = vshrl.u32 %v432, 7
      %v434 = vsub.s32 %v431, %v433
      %v435 = vrot.slane %v428, %v434
      %v437 = vunpack.c.l.s4 1966171168
      %v438 = vunpack.c.0.s8 %v437
      %v439 = vlaneseq
      %v440 = vshrl.u32 %v439, 7
      %v441 = vsub.s32 %v438, %v440
      %v442 = vrot.slane %v435, %v441
      %v444 = vlaneseq
      %vm445 = vcmp.ge.s32.totalorder %v444, 0
      %vm446 = vcmp.lt.s32.totalorder %v444, 256
      %vm447 = vmand %vm445, %vm446
      %448 = vst.msk [vmem:[%s222] sm:$0x3] %vm447, %v442
      %p449 = scmp.lt.s32.totalorder %s16, 1
      %s450 = scalar_select %p449, %s16, 1
      %s451 = smul.addr %s450, 2
      %s452 = scalar_lea.vmem %s5, %s451
      // Predicated region
      $region41: #{model_forward.1} parent=39 // pred_check
        %p453 = pneg %p144
      $region42: #{model_forward.1} parent=39 // pred_check_branch
        %455 = sbr.rel (%p453) target = $region44
      $region43: #{model_forward.1} parent=39 // pred_region
        _
      $region44: #{model_forward.1} parent=39 // pred_fallthru
        _
    $region40: #{model_forward.1} parent=5 // pred_fallthru
      _
    %p456 = scmp.le.s32.totalorder 2, %s11
    // Predicated region
    $region45: #{model_forward.1} parent=5 // pred_check
      %p457 = pneg %p456
    $region46: #{model_forward.1} parent=5 // pred_check_branch
      %459 = sbr.rel (%p457) target = $region48
    $region47: #{model_forward.1} parent=5 // pred_region
      %s460 = ssub.s32 %s11, 2
      // Predicated region
      $region49: #{model_forward.1} parent=47 // pred_check
        %p461 = pneg %p150
      $region50: #{model_forward.1} parent=47 // pred_check_branch
        %463 = sbr.rel (%p461) target = $region52
      $region51: #{model_forward.1} parent=47 // pred_region
        %p464 = scmp.lt.s32.totalorder %s17, 1
        %s465 = scalar_select %p464, %s17, 1
        %s466 = smul.addr %s465, 2
        %s467 = scalar_lea.vmem %s5, %s466
      $region52: #{model_forward.1} parent=47 // pred_fallthru
        _
    $region48: #{model_forward.1} parent=5 // pred_fallthru
      _
  $region6: #{model_forward.1} parent=0 // loop_footer
    %s15 = sadd.s32 1, %s11
  $region7: #{model_forward.1} parent=0 // loop_footer_branch
    %10 = sbr.rel target = $region3
  $region8: #{model_forward.1} parent=0 // loop_exit
    _

</llo_original>
